<compile_context>
chip_gen: v5e
topology: v5e:2x2
jax: 0.10.0
libtpu: 0.0.40
codegen_flags: <defaults>
</compile_context>

<pallas_src>
import jax
import jax.numpy as jnp
from jax.experimental import pallas as pl
from jax.experimental.pallas import tpu as pltpu

hidden_sizes = [32, 16]
latent_size = 64
input_size = latent_size
output_size = 1


def classifier_kernel(x_ref, w1_ref, b1_ref, w2_ref, b2_ref, w3_ref, b3_ref, o_ref):
    # x_ref: (F, tile); w*_ref: (out, in); b*_ref: (out, 1); o_ref: (1, tile)
    x = x_ref[...]
    # Layer 1: Linear(64 -> 32) + ReLU   (batch on MXU N axis / vreg lanes)
    h1 = jnp.dot(w1_ref[...], x, preferred_element_type=jnp.float32) + b1_ref[...]
    h1 = jnp.maximum(h1, 0.0)
    # Layer 2: Linear(32 -> 16) + ReLU
    h2 = jnp.dot(w2_ref[...], h1, preferred_element_type=jnp.float32) + b2_ref[...]
    h2 = jnp.maximum(h2, 0.0)
    # Layer 3: Linear(16 -> 1) + Sigmoid  -> lane-dense (1, tile) store
    logits = jnp.dot(w3_ref[...], h2, preferred_element_type=jnp.float32) + b3_ref[...]
    o_ref[...] = jax.nn.sigmoid(logits)


def classifier_forward(x, params, *, block_batch=None):
    """x: (B, input_size) float32. params: dict of weights/biases (see init_params).

    Returns (B, output_size) float32, matching the PyTorch module's forward.
    """
    B, F = x.shape
    assert F == input_size

    # Lane-aligned batch tile: multiple of 128, capped so the double-buffered
    # x tile stays small (well under every generation's scoped-VMEM default).
    if block_batch is None:
        block_batch = min(2048, pl.cdiv(B, 128) * 128)
    assert block_batch % 128 == 0, "block_batch must be a multiple of 128 (lane width)"

    padded_B = pl.cdiv(B, block_batch) * block_batch
    grid = (padded_B // block_batch,)

    # Layout plumbing (outside the kernel, runs once):
    #   x  -> (F, padded_B)   batch on lanes, zero-padded ragged tail
    #   w  -> (out, in)       so the kernel does  W^T @ h
    #   b  -> (out, 1)        broadcasts across the lane (batch) axis
    x_t = x.T
    if padded_B != B:
        x_t = jnp.pad(x_t, ((0, 0), (0, padded_B - B)))

    w1, b1 = params["w1"].T, params["b1"].T
    w2, b2 = params["w2"].T, params["b2"].T
    w3, b3 = params["w3"].T, params["b3"].T

    resident = lambda arr: pl.BlockSpec(arr.shape, lambda i: (0, 0))

    out_t = pl.pallas_call(
        classifier_kernel,
        out_shape=jax.ShapeDtypeStruct((output_size, padded_B), jnp.float32),
        grid_spec=pltpu.PrefetchScalarGridSpec(
            num_scalar_prefetch=0,
            grid=grid,
            in_specs=[
                pl.BlockSpec((F, block_batch), lambda i: (0, i)),  # x tile over batch
                resident(w1), resident(b1),
                resident(w2), resident(b2),
                resident(w3), resident(b3),
            ],
            out_specs=pl.BlockSpec((output_size, block_batch), lambda i: (0, i)),
        ),
        compiler_params=pltpu.CompilerParams(
            dimension_semantics=("parallel",),
        ),
    )(x_t, w1, b1, w2, b2, w3, b3)

    # Back to the PyTorch layout: (B, 1)
    return out_t[:, :B].T


def init_params(key):
    """Deterministic init mimicking PyTorch nn.Linear default U(-1/sqrt(fan_in), 1/sqrt(fan_in))."""
    dims = [input_size] + hidden_sizes + [output_size]  # [64, 32, 16, 1]
    params = {}
    for idx in range(len(dims) - 1):
        fan_in, fan_out = dims[idx], dims[idx + 1]
        key, kw, kb = jax.random.split(key, 3)
        bound = 1.0 / jnp.sqrt(float(fan_in))
        # stored as (in, out); the wrapper transposes once for the kernel
        params[f"w{idx + 1}"] = jax.random.uniform(
            kw, (fan_in, fan_out), jnp.float32, minval=-bound, maxval=bound
        )
        params[f"b{idx + 1}"] = jax.random.uniform(
            kb, (1, fan_out), jnp.float32, minval=-bound, maxval=bound
        )
    return params


def classifier_ref(x, params):
    """Pure-JAX reference of the same forward pass (for sanity checking)."""
    h = jnp.maximum(x @ params["w1"] + params["b1"], 0.0)
    h = jnp.maximum(h @ params["w2"] + params["b2"], 0.0)
    return jax.nn.sigmoid(h @ params["w3"] + params["b3"])


if __name__ == "__main__":
    key = jax.random.PRNGKey(0)
    key, kx1, kx2 = jax.random.split(key, 3)
    params = init_params(key)

    # Small shape consistent with the module.
    batch = 8
    x = jax.random.normal(kx1, (batch, input_size), jnp.float32)
    out = jax.block_until_ready(classifier_forward(x, params))
    ref = classifier_ref(x, params)
    assert out.shape == (batch, output_size), out.shape
    assert jnp.allclose(out, ref, atol=1e-5, rtol=1e-5), (
        f"max abs diff {jnp.max(jnp.abs(out - ref))}"
    )

    # Multi-tile + ragged-batch path (grid > 1, zero-padded tail sliced off).
    batch2 = 300
    x2 = jax.random.normal(kx2, (batch2, input_size), jnp.float32)
    out2 = jax.block_until_ready(classifier_forward(x2, params, block_batch=128))
    ref2 = classifier_ref(x2, params)
    assert out2.shape == (batch2, output_size), out2.shape
    assert jnp.allclose(out2, ref2, atol=1e-5, rtol=1e-5), (
        f"max abs diff {jnp.max(jnp.abs(out2 - ref2))}"
    )

    print("KERNEL_OK")
</pallas_src>

<mosaic_0001>
module attributes {stable_mosaic.version = 11 : i64} {
  func.func @classifier_kernel(%arg0: i32, %arg1: memref<64x128xf32, #tpu.memory_space<vmem>>, %arg2: memref<32x64xf32, #tpu.memory_space<vmem>>, %arg3: memref<32x1xf32, #tpu.memory_space<vmem>>, %arg4: memref<16x32xf32, #tpu.memory_space<vmem>>, %arg5: memref<16x1xf32, #tpu.memory_space<vmem>>, %arg6: memref<1x16xf32, #tpu.memory_space<vmem>>, %arg7: memref<1x1xf32, #tpu.memory_space<vmem>>, %arg8: memref<1x128xf32, #tpu.memory_space<vmem>>) attributes {dimension_semantics = [#tpu.dimension_semantics<parallel>], iteration_bounds = array<i64: 1>, scalar_prefetch = 0 : i64, scratch_operands = 0 : i64, tpu.core_type = #tpu.core_type<tc>, window_params = [{transform_indices = @transform_0, window_bounds = array<i64: 64, 128>}, {pipeline_mode = #tpu.pipeline_mode<synchronous>, transform_indices = @transform_1, window_bounds = array<i64: 32, 64>}, {pipeline_mode = #tpu.pipeline_mode<synchronous>, transform_indices = @transform_2, window_bounds = array<i64: 32, 1>}, {pipeline_mode = #tpu.pipeline_mode<synchronous>, transform_indices = @transform_3, window_bounds = array<i64: 16, 32>}, {pipeline_mode = #tpu.pipeline_mode<synchronous>, transform_indices = @transform_4, window_bounds = array<i64: 16, 1>}, {pipeline_mode = #tpu.pipeline_mode<synchronous>, transform_indices = @transform_5, window_bounds = array<i64: 1, 16>}, {pipeline_mode = #tpu.pipeline_mode<synchronous>, transform_indices = @transform_6, window_bounds = array<i64: 1, 1>}, {transform_indices = @transform_7, window_bounds = array<i64: 1, 128>}]} {
    %c0 = arith.constant 0 : index
    %c0_0 = arith.constant 0 : index
    %0 = vector.load %arg1[%c0, %c0_0] : memref<64x128xf32, #tpu.memory_space<vmem>>, vector<64x128xf32>
    %c0_1 = arith.constant 0 : index
    %c0_2 = arith.constant 0 : index
    %1 = vector.load %arg2[%c0_1, %c0_2] : memref<32x64xf32, #tpu.memory_space<vmem>>, vector<32x64xf32>
    %cst = arith.constant dense<0.000000e+00> : vector<32x128xf32>
    %2 = tpu.matmul %1, %0, %cst {dimension_numbers = #tpu.dot_dimension_numbers<[1], [0], [0], [1], [0, 0, 1, 1], [], []>} : vector<32x64xf32>, vector<64x128xf32>, vector<32x128xf32> -> vector<32x128xf32>
    %c0_3 = arith.constant 0 : index
    %c0_4 = arith.constant 0 : index
    %3 = vector.load %arg3[%c0_3, %c0_4] : memref<32x1xf32, #tpu.memory_space<vmem>>, vector<32x1xf32>
    %4 = vector.broadcast %3 : vector<32x1xf32> to vector<32x128xf32>
    %5 = arith.addf %2, %4 : vector<32x128xf32>
    %cst_5 = arith.constant 0.000000e+00 : f32
    %6 = vector.broadcast %cst_5 : f32 to vector<32x128xf32>
    %7 = arith.maximumf %5, %6 : vector<32x128xf32>
    %c0_6 = arith.constant 0 : index
    %c0_7 = arith.constant 0 : index
    %8 = vector.load %arg4[%c0_6, %c0_7] : memref<16x32xf32, #tpu.memory_space<vmem>>, vector<16x32xf32>
    %cst_8 = arith.constant dense<0.000000e+00> : vector<16x128xf32>
    %9 = tpu.matmul %8, %7, %cst_8 {dimension_numbers = #tpu.dot_dimension_numbers<[1], [0], [0], [1], [0, 0, 1, 1], [], []>} : vector<16x32xf32>, vector<32x128xf32>, vector<16x128xf32> -> vector<16x128xf32>
    %c0_9 = arith.constant 0 : index
    %c0_10 = arith.constant 0 : index
    %10 = vector.load %arg5[%c0_9, %c0_10] : memref<16x1xf32, #tpu.memory_space<vmem>>, vector<16x1xf32>
    %11 = vector.broadcast %10 : vector<16x1xf32> to vector<16x128xf32>
    %12 = arith.addf %9, %11 : vector<16x128xf32>
    %cst_11 = arith.constant 0.000000e+00 : f32
    %13 = vector.broadcast %cst_11 : f32 to vector<16x128xf32>
    %14 = arith.maximumf %12, %13 : vector<16x128xf32>
    %c0_12 = arith.constant 0 : index
    %c0_13 = arith.constant 0 : index
    %15 = vector.load %arg6[%c0_12, %c0_13] : memref<1x16xf32, #tpu.memory_space<vmem>>, vector<1x16xf32>
    %cst_14 = arith.constant dense<0.000000e+00> : vector<1x128xf32>
    %16 = tpu.matmul %15, %14, %cst_14 {dimension_numbers = #tpu.dot_dimension_numbers<[1], [0], [0], [1], [0, 0, 1, 1], [], []>} : vector<1x16xf32>, vector<16x128xf32>, vector<1x128xf32> -> vector<1x128xf32>
    %c0_15 = arith.constant 0 : index
    %c0_16 = arith.constant 0 : index
    %17 = vector.load %arg7[%c0_15, %c0_16] : memref<1x1xf32, #tpu.memory_space<vmem>>, vector<1x1xf32>
    %18 = vector.broadcast %17 : vector<1x1xf32> to vector<1x128xf32>
    %19 = arith.addf %16, %18 : vector<1x128xf32>
    %20 = arith.negf %19 : vector<1x128xf32>
    %21 = math.exp %20 : vector<1x128xf32>
    %cst_17 = arith.constant 1.000000e+00 : f32
    %22 = vector.broadcast %cst_17 : f32 to vector<1x128xf32>
    %23 = arith.addf %22, %21 : vector<1x128xf32>
    %24 = arith.divf %22, %23 : vector<1x128xf32>
    %c0_18 = arith.constant 0 : index
    %c0_19 = arith.constant 0 : index
    %25 = vector.load %arg8[%c0_18, %c0_19] : memref<1x128xf32, #tpu.memory_space<vmem>>, vector<1x128xf32>
    tpu.vector_store %arg8[%c0_18, %c0_19], %24 {strides = array<i32>} : memref<1x128xf32, #tpu.memory_space<vmem>>, vector<1x128xf32>,
    return
  }
  func.func @transform_0(%arg0: i32) -> (i32, i32) {
    %c0_i32 = arith.constant 0 : i32
    %c0_i32_0 = arith.constant 0 : i32
    return %c0_i32, %arg0 : i32, i32
  }
  func.func @transform_1(%arg0: i32) -> (i32, i32) {
    %c0_i32 = arith.constant 0 : i32
    %c0_i32_0 = arith.constant 0 : i32
    %c0_i32_1 = arith.constant 0 : i32
    return %c0_i32, %c0_i32_0 : i32, i32
  }
  func.func @transform_2(%arg0: i32) -> (i32, i32) {
    %c0_i32 = arith.constant 0 : i32
    %c0_i32_0 = arith.constant 0 : i32
    %c0_i32_1 = arith.constant 0 : i32
    return %c0_i32, %c0_i32_0 : i32, i32
  }
  func.func @transform_3(%arg0: i32) -> (i32, i32) {
    %c0_i32 = arith.constant 0 : i32
    %c0_i32_0 = arith.constant 0 : i32
    %c0_i32_1 = arith.constant 0 : i32
    return %c0_i32, %c0_i32_0 : i32, i32
  }
  func.func @transform_4(%arg0: i32) -> (i32, i32) {
    %c0_i32 = arith.constant 0 : i32
    %c0_i32_0 = arith.constant 0 : i32
    %c0_i32_1 = arith.constant 0 : i32
    return %c0_i32, %c0_i32_0 : i32, i32
  }
  func.func @transform_5(%arg0: i32) -> (i32, i32) {
    %c0_i32 = arith.constant 0 : i32
    %c0_i32_0 = arith.constant 0 : i32
    %c0_i32_1 = arith.constant 0 : i32
    return %c0_i32, %c0_i32_0 : i32, i32
  }
  func.func @transform_6(%arg0: i32) -> (i32, i32) {
    %c0_i32 = arith.constant 0 : i32
    %c0_i32_0 = arith.constant 0 : i32
    %c0_i32_1 = arith.constant 0 : i32
    return %c0_i32, %c0_i32_0 : i32, i32
  }
  func.func @transform_7(%arg0: i32) -> (i32, i32) {
    %c0_i32 = arith.constant 0 : i32
    %c0_i32_0 = arith.constant 0 : i32
    return %c0_i32, %arg0 : i32, i32
  }
}

</mosaic_0001>

<llo_original>
// kernel: tpu_custom_call.1
$region0: #{tpu_custom_call.1}
  #allocation0 [shape = 'u32[]', space=smem, size = 0x4, offset = 0x4, fixed_abs, tag = 'smem constant byte address 0x4 - core index']
  #allocation1 [shape = 'u32[72,128]{1,0:T(1,128)}', space=vmem, size = 0x9000, scoped, tag = 'internal scratch']
  #allocation2 [shape = 'f32[1,1]{1,0:T(1,128)S(1)}', space=vmem, size = 0x200, scoped, tag = 'scoped memory for tpu_custom_call.1']
  %s0 = inlined_call_operand.hbm [shape: f32[64,128], index: 0, kind: input, shape index: {}]
  %s1 = inlined_call_operand.vmem [shape: f32[32,64], index: 1, kind: input, shape index: {}]
  %s2 = inlined_call_operand.vmem [shape: f32[32,1], index: 2, kind: input, shape index: {}]
  %s3 = inlined_call_operand.vmem [shape: f32[16,32], index: 3, kind: input, shape index: {}]
  %s4 = inlined_call_operand.vmem [shape: f32[16,1], index: 4, kind: input, shape index: {}]
  %s5 = inlined_call_operand.vmem [shape: f32[1,16], index: 5, kind: input, shape index: {}]
  %s6 = inlined_call_operand.<no memory space> [shape: f32[1,1], index: 6, kind: input, shape index: {}]
  %s7 = inlined_call_operand.hbm [shape: f32[1,128], index: 7, kind: output, shape index: {}]
  %s8 = sld [smem:[#allocation0]]
  $region42: #{tpu_custom_call.1} parent=0
    _
  %s10 = ssub.s32 1, %s8
  %s11 = scalar_select 0, %s10, %s8
  %v12 = vstv %s6
  %13 = vst [vmem:[#allocation2] sm:$0x1] %v12
  $region1: #{tpu_custom_call.1} parent=0
    #allocation3 [shape = 'u8[32768]{0}', space=vmem, size = 0x8000, scoped, tag = 'input window, operand 0, single buffered']
    #allocation4 [shape = 's32[1]{0}', space=sflag, size = 0x4, scoped, tag = 'scoped memory for tpu_custom_call.1']
    #allocation5 [shape = 's32[1]{0}', space=sflag, size = 0x4, scoped, tag = 'scoped memory for tpu_custom_call.1']
    #allocation6 [shape = 'u8[512]{0}', space=vmem, size = 0x400, scoped, tag = 'output window, operand 0, single buffered']
    %14 = vsyncpa [#allocation4], 0
    %15 = vsyncpa [#allocation5], 0
    // Predicated region
    $region2: #{tpu_custom_call.1} parent=1 // pred_check
      _
    $region3: #{tpu_custom_call.1} parent=1 // pred_check_branch
      %17 = sbr.rel (0) target = $region5
    $region4: #{tpu_custom_call.1} parent=1 // pred_region
      %19 = vsyncadd [#allocation4], 0
      %s20 = sshll.u32 %s0, 4
      %s21 = int_to_ptr.hbm [resolvable:$true] %s20
      %s22 = sshll.u32 [#allocation3], 4
      %s23 = int_to_ptr.vmem [resolvable:$true] %s22
      %28 = dma.hbm_to_vmem [thread:$0]  %s21, 1024, %s23, [#allocation4], 128, 128, 8
    $region5: #{tpu_custom_call.1} parent=1 // pred_fallthru
      _
    // Predicated region
    $region6: #{tpu_custom_call.1} parent=1 // pred_check
      _
    $region7: #{tpu_custom_call.1} parent=1 // pred_check_branch
      %30 = sbr.rel (0) target = $region9
    $region8: #{tpu_custom_call.1} parent=1 // pred_region
      _
    $region9: #{tpu_custom_call.1} parent=1 // pred_fallthru
      _
    // Predicated region
    $region10: #{tpu_custom_call.1} parent=1 // pred_check
      _
    $region11: #{tpu_custom_call.1} parent=1 // pred_check_branch
      %32 = sbr.rel (0) target = $region13
    $region12: #{tpu_custom_call.1} parent=1 // pred_region
      _
    $region13: #{tpu_custom_call.1} parent=1 // pred_fallthru
      _
    // Predicated region
    $region14: #{tpu_custom_call.1} parent=1 // pred_check
      _
    $region15: #{tpu_custom_call.1} parent=1 // pred_check_branch
      %34 = sbr.rel (0) target = $region17
    $region16: #{tpu_custom_call.1} parent=1 // pred_region
      _
    $region17: #{tpu_custom_call.1} parent=1 // pred_fallthru
      _
    // Predicated region
    $region18: #{tpu_custom_call.1} parent=1 // pred_check
      _
    $region19: #{tpu_custom_call.1} parent=1 // pred_check_branch
      %36 = sbr.rel (0) target = $region21
    $region20: #{tpu_custom_call.1} parent=1 // pred_region
      _
    $region21: #{tpu_custom_call.1} parent=1 // pred_fallthru
      _
    // Predicated region
    $region22: #{tpu_custom_call.1} parent=1 // pred_check
      _
    $region23: #{tpu_custom_call.1} parent=1 // pred_check_branch
      %38 = sbr.rel (0) target = $region25
    $region24: #{tpu_custom_call.1} parent=1 // pred_region
      _
    $region25: #{tpu_custom_call.1} parent=1 // pred_fallthru
      _
    // Predicated region
    $region26: #{tpu_custom_call.1} parent=1 // pred_check
      _
    $region27: #{tpu_custom_call.1} parent=1 // pred_check_branch
      %40 = sbr.rel (0) target = $region29
    $region28: #{tpu_custom_call.1} parent=1 // pred_region
      _
    $region29: #{tpu_custom_call.1} parent=1 // pred_fallthru
      _
    // Predicated region
    $region30: #{tpu_custom_call.1} parent=1 // pred_check
      _
    $region31: #{tpu_custom_call.1} parent=1 // pred_check_branch
      %42 = sbr.rel (0) target = $region33
    $region32: #{tpu_custom_call.1} parent=1 // pred_region
      %44 = dma.done [#allocation4], 1024
    $region33: #{tpu_custom_call.1} parent=1 // pred_fallthru
      _
    %v45 = vld [vmem:[#allocation3] sm:$0xff]
    %v46 = vld [vmem:[#allocation3 + $0x8] sm:$0xff]
    %v47 = vld [vmem:[#allocation3 + $0x10] sm:$0xff]
    %v48 = vld [vmem:[#allocation3 + $0x18] sm:$0xff]
    %v49 = vld [vmem:[#allocation3 + $0x20] sm:$0xff]
    %v50 = vld [vmem:[#allocation3 + $0x28] sm:$0xff]
    %v51 = vld [vmem:[#allocation3 + $0x30] sm:$0xff]
    %v52 = vld [vmem:[#allocation3 + $0x38] sm:$0xff]
    %v53 = vld [vmem:[%s1] sm:$0xff]
    %v54 = vld [vmem:[%s1 + $0x8] sm:$0xff]
    %v55 = vld [vmem:[%s1 + $0x10] sm:$0xff]
    %v56 = vld [vmem:[%s1 + $0x18] sm:$0xff]
    %v57 = vld [vmem:[%s2] sm:$0xff]
    %v58 = vld [vmem:[%s2 + $0x8] sm:$0xff]
    %v59 = vld [vmem:[%s2 + $0x10] sm:$0xff]
    %v60 = vld [vmem:[%s2 + $0x18] sm:$0xff]
    %62 = vset.pattern.permute.xlu0 0
    %63 = vperm.xlu0 %62, %v57
    %v64 = vpop.permute.xlu0 %63
    %67 = vset.pattern.permute.xlu0 0
    %68 = vperm.xlu0 %67, %v58
    %v69 = vpop.permute.xlu0 %68
    %72 = vset.pattern.permute.xlu0 0
    %73 = vperm.xlu0 %72, %v59
    %v74 = vpop.permute.xlu0 %73
    %77 = vset.pattern.permute.xlu0 0
    %78 = vperm.xlu0 %77, %v60
    %v79 = vpop.permute.xlu0 %78
    %vm81 = vcmask 523264
    %v83 = vsel %vm81, %v53, 0
    %v86 = vsel %vm81, %v54, 0
    %v89 = vsel %vm81, %v55, 0
    %v92 = vsel %vm81, %v56, 0
    %94 = vmatpush.msra.mxu0 0.0
    %95 = vmatpush.msra.mxu0 0.0
    %96 = vmatpush.msra.mxu0 0.0
    %97 = vmatpush.msra.mxu0 0.0
    %98 = vmatpush.msra.mxu0 0.0
    %99 = vmatpush.msra.mxu0 0.0
    %100 = vmatpush.msra.mxu0 0.0
    %101 = vmatpush.msra.mxu0 0.0
    %102 = vmatpush.msra.mxu0 %v52
    %103 = vmatpush.msra.mxu0 %v51
    %104 = vmatpush.msra.mxu0 %v50
    %105 = vmatpush.msra.mxu0 %v49
    %106 = vmatpush.msra.mxu0 %v48
    %107 = vmatpush.msra.mxu0 %v47
    %108 = vmatpush.msra.mxu0 %v46
    %109 = vmatpush.msra.mxu0 %v45
    %110 = vmatmul.f32.gmra.mxu0 %v83
    %v111 = vpop.f32.mrf.mxu0
    %v112 = vadd.f32 %v64, %v111
    %113 = vmatmul.f32.gmra.mxu0 %v86
    %v114 = vpop.f32.mrf.mxu0
    %v115 = vadd.f32 %v69, %v114
    %116 = vmatmul.f32.gmra.mxu0 %v89
    %v117 = vpop.f32.mrf.mxu0
    %v118 = vadd.f32 %v74, %v117
    %119 = vmatmul.f32.gmra.mxu0 %v92
    %v120 = vpop.f32.mrf.mxu0
    %v121 = vadd.f32 %v79, %v120
    %122 = vdwg.mxu0
    %v123 = vmax.f32 %v112, 0.0
    %v124 = vmax.f32 %v115, 0.0
    %v125 = vmax.f32 %v118, 0.0
    %v126 = vmax.f32 %v121, 0.0
    %v127 = vld [vmem:[%s3] sm:$0xff]
    %v128 = vld [vmem:[%s3 + $0x8] sm:$0xff]
    %v129 = vld [vmem:[%s4] sm:$0xff]
    %v130 = vld [vmem:[%s4 + $0x8] sm:$0xff]
    %132 = vset.pattern.permute.xlu0 0
    %133 = vperm.xlu0 %132, %v129
    %v134 = vpop.permute.xlu0 %133
    %137 = vset.pattern.permute.xlu0 0
    %138 = vperm.xlu0 %137, %v130
    %v139 = vpop.permute.xlu0 %138
    %vm141 = vcmask 261120
    %v143 = vsel %vm141, %v127, 0
    %v146 = vsel %vm141, %v128, 0
    %148 = vmatpush.msra.mxu0 0.0
    %149 = vmatpush.msra.mxu0 0.0
    %150 = vmatpush.msra.mxu0 0.0
    %151 = vmatpush.msra.mxu0 0.0
    %152 = vmatpush.msra.mxu0 0.0
    %153 = vmatpush.msra.mxu0 0.0
    %154 = vmatpush.msra.mxu0 0.0
    %155 = vmatpush.msra.mxu0 0.0
    %156 = vmatpush.msra.mxu0 0.0
    %157 = vmatpush.msra.mxu0 0.0
    %158 = vmatpush.msra.mxu0 0.0
    %159 = vmatpush.msra.mxu0 0.0
    %160 = vmatpush.msra.mxu0 %v126
    %161 = vmatpush.msra.mxu0 %v125
    %162 = vmatpush.msra.mxu0 %v124
    %163 = vmatpush.msra.mxu0 %v123
    %164 = vmatmul.f32.gmra.mxu0 %v143
    %v165 = vpop.f32.mrf.mxu0
    %v166 = vadd.f32 %v134, %v165
    %167 = vmatmul.f32.gmra.mxu0 %v146
    %v168 = vpop.f32.mrf.mxu0
    %v169 = vadd.f32 %v139, %v168
    %170 = vdwg.mxu0
    %v171 = vmax.f32 %v166, 0.0
    %v172 = vmax.f32 %v169, 0.0
    %v173 = vld [vmem:[%s5] sm:$0x1]
    %v174 = vld [vmem:[#allocation2] sm:$0x1]
    %176 = vset.pattern.permute.xlu0 0
    %177 = vperm.xlu0 %176, %v174
    %v178 = vpop.permute.xlu0 %177
    %v180 = vperm.slane %v178, 0
    %vm181 = vcmask 130048
    %v183 = vsel %vm181, %v173, 0
    %185 = vmatpush.msra.mxu0 0.0
    %186 = vmatpush.msra.mxu0 0.0
    %187 = vmatpush.msra.mxu0 0.0
    %188 = vmatpush.msra.mxu0 0.0
    %189 = vmatpush.msra.mxu0 0.0
    %190 = vmatpush.msra.mxu0 0.0
    %191 = vmatpush.msra.mxu0 0.0
    %192 = vmatpush.msra.mxu0 0.0
    %193 = vmatpush.msra.mxu0 0.0
    %194 = vmatpush.msra.mxu0 0.0
    %195 = vmatpush.msra.mxu0 0.0
    %196 = vmatpush.msra.mxu0 0.0
    %197 = vmatpush.msra.mxu0 0.0
    %198 = vmatpush.msra.mxu0 0.0
    %199 = vmatpush.msra.mxu0 %v172
    %200 = vmatpush.msra.mxu0 %v171
    %201 = vmatmul.f32.gmra.mxu0 %v183
    %v202 = vpop.f32.mrf.mxu0
    %v203 = vadd.f32 %v180, %v202
    %204 = vdwg.mxu0
    %v205 = vxor.u32 %v203, 2147483648
    %v206 = vmul.f32 %v205, 1.442695
    %v207 = vpow.pop %v206
    %v208 = vadd.f32 %v207, 1.0
    %v209 = vrcp.pop %v208
    %v210 = vmul.f32 %v208, %v209
    %v211 = vsub.f32 1.0, %v210
    %v212 = vmul.f32 %v209, %v211
    %v213 = vadd.f32 %v209, %v212
    %vm214 = vweird.f32 %v208
    %vm215 = vweird.f32 %v209
    %vm216 = vmor %vm214, %vm215
    %v217 = vsel %vm216, %v209, %v213
    %v218 = vand.u32 2147483647, %v208
    %vm219 = vcmp.eq.f32.partialorder %v218, 8.507059e+37
    %v220 = vand.u32 %v208, 2147483648
    %v221 = vor.u32 1.1754944e-38, %v220
    %v222 = vsel %vm219, %v221, %v217
    %v223 = vmul.f32 1.0, %v222
    %224 = vst [vmem:[#allocation6] sm:$0x1] %v223
    // Predicated region
    $region34: #{tpu_custom_call.1} parent=1 // pred_check
      _
    $region35: #{tpu_custom_call.1} parent=1 // pred_check_branch
      %226 = sbr.rel (0) target = $region37
    $region36: #{tpu_custom_call.1} parent=1 // pred_region
      %228 = vsyncadd [#allocation5], 0
      %s230 = sshll.u32 [#allocation6], 4
      %s231 = int_to_ptr.vmem [resolvable:$true] %s230
      %s232 = sshll.u32 %s7, 4
      %s233 = int_to_ptr.hbm [resolvable:$true] %s232
      %235 = dma.vmem_to_hbm [thread:$0]  %s231, 16, %s233, [#allocation5]
    $region37: #{tpu_custom_call.1} parent=1 // pred_fallthru
      _
    // Predicated region
    $region38: #{tpu_custom_call.1} parent=1 // pred_check
      _
    $region39: #{tpu_custom_call.1} parent=1 // pred_check_branch
      %237 = sbr.rel (0) target = $region41
    $region40: #{tpu_custom_call.1} parent=1 // pred_region
      %239 = dma.done [#allocation5], 16
    $region41: #{tpu_custom_call.1} parent=1 // pred_fallthru
      _
    %240 = vsyncpa [#allocation4], 1
    %241 = vsyncpa [#allocation5], 1

</llo_original>
